<compile_context>
chip_gen: v7x
topology: tpu7x:2x2x1
jax: 0.10.0
libtpu: 0.0.40
codegen_flags: <defaults>
</compile_context>

<pallas_src>
import functools

import jax
import jax.numpy as jnp
from jax import lax
from jax.experimental import pallas as pl
from jax.experimental.pallas import tpu as pltpu


def _round_up(x, m):
    return ((x + m - 1) // m) * m


def _vmem_capacity_bytes():
    """Physical VMEM per core (v5e/v6e: 128 MiB, v7x: 64 MiB)."""
    try:
        return int(pltpu.get_tpu_info().vmem_capacity_bytes)
    except Exception:  # conservative fallback (v7x-sized)
        return 64 * 2 ** 20


def _buf_bytes(shape, itemsize):
    """Conservative VMEM footprint of one buffer ((8,128)-tile padded)."""
    if len(shape) == 1:
        shape = (1, shape[0])
    lead = 1
    for d in shape[:-2]:
        lead *= int(d)
    return lead * _round_up(int(shape[-2]), 8) * _round_up(int(shape[-1]), 128) * itemsize


def _vmem_estimate(tile_b, obs_dim, act_dim, h1p, h2p, in_bytes, mm_bytes):
    """Rough VMEM high-water mark per grid step: double-buffered streamed
    inputs/outputs + single-buffered weights + in-kernel intermediates."""
    bb = _buf_bytes
    streamed = 2 * (bb((tile_b, obs_dim), in_bytes) + bb((tile_b, act_dim), in_bytes))
    outputs = 2 * bb((1, tile_b), 4)
    weights = (bb((h1p, obs_dim), mm_bytes) + bb((h1p, act_dim), mm_bytes)
               + bb((h2p, 2 * h1p), mm_bytes)
               + 2 * bb((h1p, 1), 4) + 2 * bb((h2p, 1), 4))
    interm = (bb((tile_b, obs_dim), mm_bytes) + bb((obs_dim, tile_b), mm_bytes)
              + bb((tile_b, act_dim), mm_bytes) + bb((act_dim, tile_b), mm_bytes)
              + 2 * bb((h1p, tile_b), 4)            # s, a (f32)
              + bb((2 * h1p, tile_b), mm_bytes)     # fused-K concat operand
              + 2 * bb((h2p, tile_b), 4)            # h (+ slack for the mul temp)
              + bb((1, tile_b), 4))
    return streamed + outputs + weights + interm


def _critic_kernel(obs_ref, act_ref,
                   ws_ref, bs_ref, wa_ref, ba_ref,
                   w1_ref, b1_ref, w2_ref, b2_ref,
                   out_ref):
    """One batch tile.  Activations live as [features, TILE_B] (batch on lanes)."""
    mm_dtype = ws_ref.dtype
    dn = (((1,), (1,)), ((), ()))      # contract feature axes: W @ x^T

    # Inputs arrive in natural [TILE_B, feat] layout; cast + tiny relayout in VMEM.
    obs_t = obs_ref[...].astype(mm_dtype)            # [TILE_B, obs_dim]
    act_t = act_ref[...].astype(mm_dtype)            # [TILE_B, act_dim]

    # State / action expansions (+ ReLU): MXU matmuls, f32 accumulation,
    # bias-add / ReLU on the VPU in f32 (works on v5e/v6e/v7x alike).
    s = lax.dot_general(ws_ref[...], obs_t, dn, preferred_element_type=jnp.float32)
    s = jnp.maximum(s + bs_ref[...], 0.0)            # [h1p, TILE_B]
    a = lax.dot_general(wa_ref[...], act_t, dn, preferred_element_type=jnp.float32)
    a = jnp.maximum(a + ba_ref[...], 0.0)            # [h1p, TILE_B]

    # ff_1: cat([s, a], 1) @ W1^T as ONE MXU push — aligned sublane concat
    # (h1p is a sublane multiple by construction) + a single K = 2*h1p matmul.
    sa = jnp.concatenate([s.astype(mm_dtype), a.astype(mm_dtype)], axis=0)
    h = jnp.dot(w1_ref[...], sa, preferred_element_type=jnp.float32)
    h = jnp.maximum(h + b1_ref[...], 0.0)            # [h2p, TILE_B]

    # ff_2 (h2 -> 1): VPU multiply + sublane reduction; scalar bias from SMEM.
    # (v6e note: if bundle profiling shows the XLU binding for very large h2,
    #  switch this to an MXU matmul with a zero-padded [8, h2] weight.)
    q = jnp.sum(h * w2_ref[...], axis=0, keepdims=True) + b2_ref[0, 0]
    out_ref[...] = q.astype(out_ref.dtype)           # [1, TILE_B] lane-dense store


def pack_params(params, matmul_dtype=jnp.float32):
    """One-time repack of PyTorch-layout params ([out, in] weights, [out] biases).

    h1 / h2 are zero-padded to sublane multiples (8 for f32, 16 for bf16) so
    intermediates / weights avoid masked sublane accesses; the padding is exact
    (zero rows stay zero through ReLU and contribute nothing).  bf16 matmul
    operands are fine on v5e too (its MXU consumes bf16; accumulation stays f32).
    """
    ws, bs, wa, ba, w1, b1, w2, b2 = params
    h1 = ws.shape[0]
    h2 = w1.shape[0]
    sub = 16 if jnp.dtype(matmul_dtype).itemsize == 2 else 8
    h1p, h2p = _round_up(h1, sub), _round_up(h2, sub)

    def pad_rows(x, n):
        return jnp.pad(x, ((0, n - x.shape[0]),) + ((0, 0),) * (x.ndim - 1))

    w1s = jnp.pad(w1[:, :h1], ((0, h2p - h2), (0, h1p - h1)))   # s half of ff_1
    w1a = jnp.pad(w1[:, h1:], ((0, h2p - h2), (0, h1p - h1)))   # a half of ff_1

    return (
        pad_rows(ws, h1p).astype(matmul_dtype),            # [h1p, obs_dim]
        pad_rows(bs, h1p)[:, None].astype(jnp.float32),     # [h1p, 1]
        pad_rows(wa, h1p).astype(matmul_dtype),             # [h1p, act_dim]
        pad_rows(ba, h1p)[:, None].astype(jnp.float32),     # [h1p, 1]
        jnp.concatenate([w1s, w1a], axis=1).astype(matmul_dtype),  # [h2p, 2*h1p]
        pad_rows(b1, h2p)[:, None].astype(jnp.float32),     # [h2p, 1]
        pad_rows(w2.T, h2p).astype(jnp.float32),            # [h2p, 1]  ff_2 weight column
        b2.reshape(1, 1).astype(jnp.float32),               # [1, 1]    ff_2 bias (SMEM)
    )


@functools.partial(jax.jit, static_argnames=("tile_b",))
def critic_forward(obs, act, packed, *, tile_b=2048):
    """obs: [B, obs_dim], act: [B, act_dim] -> q_values: [B, 1] float32.

    tile_b (batch lanes per grid step) is the primary tuning knob: per-tile
    compute is tiny, so fewer / bigger grid steps amortize the ~0.35 us
    per-step overhead.  Sweep 1024/2048/4096 for large batches.
    """
    ws, bs, wa, ba, w1, b1, w2, b2 = packed
    B, obs_dim = obs.shape
    act_dim = act.shape[1]
    h1p = ws.shape[0]
    h2p = w1.shape[0]
    mm_bytes = ws.dtype.itemsize
    in_bytes = max(obs.dtype.itemsize, act.dtype.itemsize)

    # ---- batch tiling -------------------------------------------------------
    b128 = pl.cdiv(B, 128)                        # 128-lane groups in the batch
    tile_b = max(128, min(_round_up(tile_b, 128), b128 * 128))

    # Fit the per-generation VMEM budget (v7x: 64 MiB physical) with headroom.
    vmem_cap = _vmem_capacity_bytes()
    while tile_b > 128 and _vmem_estimate(tile_b, obs_dim, act_dim, h1p, h2p,
                                          in_bytes, mm_bytes) > vmem_cap // 2:
        tile_b -= 128

    # Megacore (v7x): ensure >= 2 tiles whenever the batch allows.
    if b128 >= 2:
        tile_b = min(tile_b, pl.cdiv(b128, 2) * 128)

    # Final grid: pad the batch only to the tile boundary (bounded waste),
    # never round_up(B, tile_b).
    n_tiles = pl.cdiv(b128 * 128, tile_b)
    tile_b = pl.cdiv(b128, n_tiles) * 128         # balance tiles, trims tail waste
    n_tiles = pl.cdiv(b128 * 128, tile_b)
    b_pad = n_tiles * tile_b

    # No transpose / dtype-cast HBM pass in the wrapper: inputs stream in their
    # natural [B, feat] layout; only the (small, often zero) batch pad remains.
    if b_pad > B:
        obs = jnp.pad(obs, ((0, b_pad - B), (0, 0)))
        act = jnp.pad(act, ((0, b_pad - B), (0, 0)))

    def stream(feat):                 # batch tiles: pipelined, double-buffered
        return pl.BlockSpec((tile_b, feat), lambda i: (i, 0))

    # Whole-array VMEM residency = single-buffered weights, fetched once
    # (same effect as pl.Buffered(1) on a constant-index pipelined spec).
    vmem_resident = pl.BlockSpec(memory_space=pltpu.MemorySpace.VMEM)
    smem_scalar = pl.BlockSpec(memory_space=pltpu.MemorySpace.SMEM)

    est = _vmem_estimate(tile_b, obs_dim, act_dim, h1p, h2p, in_bytes, mm_bytes)
    vmem_limit = int(min(vmem_cap, max(32 * 2 ** 20, 2 * est)))

    flops = 2 * b_pad * (h1p * (obs_dim + act_dim) + 2 * h1p * h2p + h2p)
    bytes_accessed = (obs.size * obs.dtype.itemsize + act.size * act.dtype.itemsize
                      + b_pad * 4
                      + sum(int(p.size) * p.dtype.itemsize for p in packed))

    out = pl.pallas_call(
        _critic_kernel,
        out_shape=jax.ShapeDtypeStruct((1, b_pad), jnp.float32),
        grid=(n_tiles,),
        in_specs=[
            stream(obs_dim), stream(act_dim),
            vmem_resident, vmem_resident,        # ws, bs
            vmem_resident, vmem_resident,        # wa, ba
            vmem_resident, vmem_resident,        # w1, b1
            vmem_resident, smem_scalar,          # w2, b2
        ],
        out_specs=pl.BlockSpec((1, tile_b), lambda i: (0, i)),
        compiler_params=pltpu.CompilerParams(
            dimension_semantics=("parallel",),
            vmem_limit_bytes=vmem_limit),
        cost_estimate=pl.CostEstimate(
            flops=int(flops), transcendentals=0, bytes_accessed=int(bytes_accessed)),
    )(obs, act, ws, bs, wa, ba, w1, b1, w2, b2)

    return out[0, :B][:, None]


def init_params(key, obs_dim, act_dim, h1, h2):
    """Matches the module's init: uniform(-f, f), f = 1/sqrt(param.size(0))."""
    def linear(key, out_dim, in_dim):
        kw, kb = jax.random.split(key)
        f = 1.0 / jnp.sqrt(jnp.float32(out_dim))
        w = jax.random.uniform(kw, (out_dim, in_dim), jnp.float32, -f, f)
        b = jax.random.uniform(kb, (out_dim,), jnp.float32, -f, f)
        return w, b

    k1, k2, k3, k4 = jax.random.split(key, 4)
    ws, bs = linear(k1, h1, obs_dim)   # s_expansion
    wa, ba = linear(k2, h1, act_dim)   # a_expansion
    w1, b1 = linear(k3, h2, 2 * h1)    # ff_1
    w2, b2 = linear(k4, 1, h2)         # ff_2
    return ws, bs, wa, ba, w1, b1, w2, b2


def reference_forward(obs, act, params):
    ws, bs, wa, ba, w1, b1, w2, b2 = params
    s = jax.nn.relu(obs @ ws.T + bs)
    a = jax.nn.relu(act @ wa.T + ba)
    h = jax.nn.relu(jnp.concatenate([s, a], axis=1) @ w1.T + b1)
    return h @ w2.T + b2


if __name__ == "__main__":
    key = jax.random.PRNGKey(0)

    # Config 1: small shapes consistent with the module.
    B, obs_dim, act_dim, h1, h2 = 64, 16, 8, 32, 32
    k_obs, k_act, k_p, key = jax.random.split(key, 4)
    obs = jax.random.normal(k_obs, (B, obs_dim), jnp.float32)
    act = jax.random.normal(k_act, (B, act_dim), jnp.float32)
    params = init_params(k_p, obs_dim, act_dim, h1, h2)
    q_ref = reference_forward(obs, act, params)

    # f32 matmul operands.
    q = critic_forward(obs, act, pack_params(params))
    jax.block_until_ready(q)
    assert q.shape == (B, 1)
    assert jnp.allclose(q, q_ref, atol=1e-4, rtol=1e-4)

    # bf16 matmul operands (recommended on v5e/v6e/v7x; note this quantizes
    # activations as well as weights, hence the looser tolerance).
    q16 = critic_forward(obs, act, pack_params(params, matmul_dtype=jnp.bfloat16))
    jax.block_until_ready(q16)
    assert q16.shape == (B, 1)
    assert jnp.allclose(q16, q_ref, atol=1e-1, rtol=1e-1)

    # Config 2: odd sizes — exercises batch padding, the >=2-tile megacore
    # split, and the sublane padding of h1/h2.
    B2, od2, ad2, h1b, h2b = 200, 10, 6, 36, 20
    k_obs, k_act, k_p, key = jax.random.split(key, 4)
    obs2 = jax.random.normal(k_obs, (B2, od2), jnp.float32)
    act2 = jax.random.normal(k_act, (B2, ad2), jnp.float32)
    params2 = init_params(k_p, od2, ad2, h1b, h2b)
    q2 = critic_forward(obs2, act2, pack_params(params2), tile_b=1024)
    jax.block_until_ready(q2)
    assert q2.shape == (B2, 1)
    assert jnp.allclose(q2, reference_forward(obs2, act2, params2),
                        atol=1e-4, rtol=1e-4)

    print("KERNEL_OK")
</pallas_src>

<mosaic_0001>
module attributes {stable_mosaic.version = 11 : i64} {
  func.func @_critic_kernel(%arg0: i32, %arg1: memref<128x16xf32, #tpu.memory_space<vmem>>, %arg2: memref<128x8xf32, #tpu.memory_space<vmem>>, %arg3: memref<32x16xf32, #tpu.memory_space<vmem>>, %arg4: memref<32x1xf32, #tpu.memory_space<vmem>>, %arg5: memref<32x8xf32, #tpu.memory_space<vmem>>, %arg6: memref<32x1xf32, #tpu.memory_space<vmem>>, %arg7: memref<32x64xf32, #tpu.memory_space<vmem>>, %arg8: memref<32x1xf32, #tpu.memory_space<vmem>>, %arg9: memref<32x1xf32, #tpu.memory_space<vmem>>, %arg10: memref<1x1xf32, #tpu.memory_space<smem>>, %arg11: memref<1x128xf32, #tpu.memory_space<vmem>>) attributes {dimension_semantics = [#tpu.dimension_semantics<parallel>], iteration_bounds = array<i64: 1>, scalar_prefetch = 0 : i64, scratch_operands = 0 : i64, tpu.core_type = #tpu.core_type<tc>, window_params = [{transform_indices = @transform_0, window_bounds = array<i64: 128, 16>}, {transform_indices = @transform_1, window_bounds = array<i64: 128, 8>}, {pipeline_mode = #tpu.pipeline_mode<synchronous>, transform_indices = @transform_2, window_bounds = array<i64: 32, 16>}, {pipeline_mode = #tpu.pipeline_mode<synchronous>, transform_indices = @transform_3, window_bounds = array<i64: 32, 1>}, {pipeline_mode = #tpu.pipeline_mode<synchronous>, transform_indices = @transform_4, window_bounds = array<i64: 32, 8>}, {pipeline_mode = #tpu.pipeline_mode<synchronous>, transform_indices = @transform_5, window_bounds = array<i64: 32, 1>}, {pipeline_mode = #tpu.pipeline_mode<synchronous>, transform_indices = @transform_6, window_bounds = array<i64: 32, 64>}, {pipeline_mode = #tpu.pipeline_mode<synchronous>, transform_indices = @transform_7, window_bounds = array<i64: 32, 1>}, {pipeline_mode = #tpu.pipeline_mode<synchronous>, transform_indices = @transform_8, window_bounds = array<i64: 32, 1>}, {transform_indices = @transform_9, window_bounds = array<i64: 1, 1>}, {transform_indices = @transform_10, window_bounds = array<i64: 1, 128>}]} {
    %c0 = arith.constant 0 : index
    %c0_0 = arith.constant 0 : index
    %0 = vector.load %arg1[%c0, %c0_0] : memref<128x16xf32, #tpu.memory_space<vmem>>, vector<128x16xf32>
    %c0_1 = arith.constant 0 : index
    %c0_2 = arith.constant 0 : index
    %1 = vector.load %arg2[%c0_1, %c0_2] : memref<128x8xf32, #tpu.memory_space<vmem>>, vector<128x8xf32>
    %c0_3 = arith.constant 0 : index
    %c0_4 = arith.constant 0 : index
    %2 = vector.load %arg3[%c0_3, %c0_4] : memref<32x16xf32, #tpu.memory_space<vmem>>, vector<32x16xf32>
    %cst = arith.constant dense<0.000000e+00> : vector<32x128xf32>
    %3 = tpu.matmul %2, %0, %cst {dimension_numbers = #tpu.dot_dimension_numbers<[1], [1], [0], [0], [0, 0, 1, 0], [], []>} : vector<32x16xf32>, vector<128x16xf32>, vector<32x128xf32> -> vector<32x128xf32>
    %c0_5 = arith.constant 0 : index
    %c0_6 = arith.constant 0 : index
    %4 = vector.load %arg4[%c0_5, %c0_6] : memref<32x1xf32, #tpu.memory_space<vmem>>, vector<32x1xf32>
    %5 = vector.broadcast %4 : vector<32x1xf32> to vector<32x128xf32>
    %6 = arith.addf %3, %5 : vector<32x128xf32>
    %cst_7 = arith.constant 0.000000e+00 : f32
    %7 = vector.broadcast %cst_7 : f32 to vector<32x128xf32>
    %8 = arith.maximumf %6, %7 : vector<32x128xf32>
    %c0_8 = arith.constant 0 : index
    %c0_9 = arith.constant 0 : index
    %9 = vector.load %arg5[%c0_8, %c0_9] : memref<32x8xf32, #tpu.memory_space<vmem>>, vector<32x8xf32>
    %cst_10 = arith.constant dense<0.000000e+00> : vector<32x128xf32>
    %10 = tpu.matmul %9, %1, %cst_10 {dimension_numbers = #tpu.dot_dimension_numbers<[1], [1], [0], [0], [0, 0, 1, 0], [], []>} : vector<32x8xf32>, vector<128x8xf32>, vector<32x128xf32> -> vector<32x128xf32>
    %c0_11 = arith.constant 0 : index
    %c0_12 = arith.constant 0 : index
    %11 = vector.load %arg6[%c0_11, %c0_12] : memref<32x1xf32, #tpu.memory_space<vmem>>, vector<32x1xf32>
    %12 = vector.broadcast %11 : vector<32x1xf32> to vector<32x128xf32>
    %13 = arith.addf %10, %12 : vector<32x128xf32>
    %cst_13 = arith.constant 0.000000e+00 : f32
    %14 = vector.broadcast %cst_13 : f32 to vector<32x128xf32>
    %15 = arith.maximumf %13, %14 : vector<32x128xf32>
    %16 = tpu.concatenate %8, %15 in 0 : vector<32x128xf32>, vector<32x128xf32> -> vector<64x128xf32>
    %c0_14 = arith.constant 0 : index
    %c0_15 = arith.constant 0 : index
    %17 = vector.load %arg7[%c0_14, %c0_15] : memref<32x64xf32, #tpu.memory_space<vmem>>, vector<32x64xf32>
    %cst_16 = arith.constant dense<0.000000e+00> : vector<32x128xf32>
    %18 = tpu.matmul %17, %16, %cst_16 {dimension_numbers = #tpu.dot_dimension_numbers<[1], [0], [0], [1], [0, 0, 1, 1], [], []>} : vector<32x64xf32>, vector<64x128xf32>, vector<32x128xf32> -> vector<32x128xf32>
    %c0_17 = arith.constant 0 : index
    %c0_18 = arith.constant 0 : index
    %19 = vector.load %arg8[%c0_17, %c0_18] : memref<32x1xf32, #tpu.memory_space<vmem>>, vector<32x1xf32>
    %20 = vector.broadcast %19 : vector<32x1xf32> to vector<32x128xf32>
    %21 = arith.addf %18, %20 : vector<32x128xf32>
    %cst_19 = arith.constant 0.000000e+00 : f32
    %22 = vector.broadcast %cst_19 : f32 to vector<32x128xf32>
    %23 = arith.maximumf %21, %22 : vector<32x128xf32>
    %c0_20 = arith.constant 0 : index
    %c0_21 = arith.constant 0 : index
    %24 = vector.load %arg9[%c0_20, %c0_21] : memref<32x1xf32, #tpu.memory_space<vmem>>, vector<32x1xf32>
    %25 = vector.broadcast %24 : vector<32x1xf32> to vector<32x128xf32>
    %26 = arith.mulf %23, %25 : vector<32x128xf32>
    %cst_22 = arith.constant dense<0.000000e+00> : vector<128xf32>
    %27 = vector.multi_reduction <add>, %26, %cst_22 [0] : vector<32x128xf32> to vector<128xf32>
    %28 = vector.shape_cast %27 : vector<128xf32> to vector<1x128xf32>
    %c0_23 = arith.constant 0 : index
    %c0_24 = arith.constant 0 : index
    %29 = memref.load %arg10[%c0_23, %c0_24] : memref<1x1xf32, #tpu.memory_space<smem>>
    %30 = vector.broadcast %29 : f32 to vector<1x128xf32>
    %31 = arith.addf %28, %30 : vector<1x128xf32>
    %c0_25 = arith.constant 0 : index
    %c0_26 = arith.constant 0 : index
    %32 = vector.load %arg11[%c0_25, %c0_26] : memref<1x128xf32, #tpu.memory_space<vmem>>, vector<1x128xf32>
    tpu.vector_store %arg11[%c0_25, %c0_26], %31 {strides = array<i32>} : memref<1x128xf32, #tpu.memory_space<vmem>>, vector<1x128xf32>,
    return
  }
  func.func @transform_0(%arg0: i32) -> (i32, i32) {
    %c0_i32 = arith.constant 0 : i32
    %c0_i32_0 = arith.constant 0 : i32
    return %arg0, %c0_i32 : i32, i32
  }
  func.func @transform_1(%arg0: i32) -> (i32, i32) {
    %c0_i32 = arith.constant 0 : i32
    %c0_i32_0 = arith.constant 0 : i32
    return %arg0, %c0_i32 : i32, i32
  }
  func.func @transform_2(%arg0: i32) -> (i32, i32) {
    %c0_i32 = arith.constant 0 : i32
    %c0_i32_0 = arith.constant 0 : i32
    %c0_i32_1 = arith.constant 0 : i32
    return %c0_i32, %c0_i32_0 : i32, i32
  }
  func.func @transform_3(%arg0: i32) -> (i32, i32) {
    %c0_i32 = arith.constant 0 : i32
    %c0_i32_0 = arith.constant 0 : i32
    %c0_i32_1 = arith.constant 0 : i32
    return %c0_i32, %c0_i32_0 : i32, i32
  }
  func.func @transform_4(%arg0: i32) -> (i32, i32) {
    %c0_i32 = arith.constant 0 : i32
    %c0_i32_0 = arith.constant 0 : i32
    %c0_i32_1 = arith.constant 0 : i32
    return %c0_i32, %c0_i32_0 : i32, i32
  }
  func.func @transform_5(%arg0: i32) -> (i32, i32) {
    %c0_i32 = arith.constant 0 : i32
    %c0_i32_0 = arith.constant 0 : i32
    %c0_i32_1 = arith.constant 0 : i32
    return %c0_i32, %c0_i32_0 : i32, i32
  }
  func.func @transform_6(%arg0: i32) -> (i32, i32) {
    %c0_i32 = arith.constant 0 : i32
    %c0_i32_0 = arith.constant 0 : i32
    %c0_i32_1 = arith.constant 0 : i32
    return %c0_i32, %c0_i32_0 : i32, i32
  }
  func.func @transform_7(%arg0: i32) -> (i32, i32) {
    %c0_i32 = arith.constant 0 : i32
    %c0_i32_0 = arith.constant 0 : i32
    %c0_i32_1 = arith.constant 0 : i32
    return %c0_i32, %c0_i32_0 : i32, i32
  }
  func.func @transform_8(%arg0: i32) -> (i32, i32) {
    %c0_i32 = arith.constant 0 : i32
    %c0_i32_0 = arith.constant 0 : i32
    %c0_i32_1 = arith.constant 0 : i32
    return %c0_i32, %c0_i32_0 : i32, i32
  }
  func.func @transform_9(%arg0: i32) -> (i32, i32) {
    %c0_i32 = arith.constant 0 : i32
    %c0_i32_0 = arith.constant 0 : i32
    %c0_i32_1 = arith.constant 0 : i32
    return %c0_i32, %c0_i32_0 : i32, i32
  }
  func.func @transform_10(%arg0: i32) -> (i32, i32) {
    %c0_i32 = arith.constant 0 : i32
    %c0_i32_0 = arith.constant 0 : i32
    return %c0_i32, %arg0 : i32, i32
  }
}

</mosaic_0001>

<llo_original>
// kernel: critic_forward.1
$region0: #{critic_forward.1}
  #allocation0 [shape = 'u32[]', space=smem, size = 0x4, offset = 0x4, fixed_abs, tag = 'smem constant byte address 0x4 - core index']
  #allocation1 [shape = 'u32[144,128]{1,0:T(1,128)}', space=vmem, size = 0x12000, scoped, tag = 'internal scratch']
  #allocation2 [shape = 'f32[1,1]{1,0:T(1,128)S(6)}', space=smem, size = 0x200, scoped, tag = 'scoped memory for critic_forward.1']
  %s0 = inlined_call_operand.vmem [shape: f32[128,16], index: 0, kind: input, shape index: {}]
  %s1 = inlined_call_operand.vmem [shape: f32[128,8], index: 1, kind: input, shape index: {}]
  %s2 = inlined_call_operand.vmem [shape: f32[32,16], index: 2, kind: input, shape index: {}]
  %s3 = inlined_call_operand.vmem [shape: f32[32,1], index: 3, kind: input, shape index: {}]
  %s4 = inlined_call_operand.vmem [shape: f32[32,8], index: 4, kind: input, shape index: {}]
  %s5 = inlined_call_operand.vmem [shape: f32[32,1], index: 5, kind: input, shape index: {}]
  %s6 = inlined_call_operand.vmem [shape: f32[32,64], index: 6, kind: input, shape index: {}]
  %s7 = inlined_call_operand.vmem [shape: f32[32,1], index: 7, kind: input, shape index: {}]
  %s8 = inlined_call_operand.vmem [shape: f32[32,1], index: 8, kind: input, shape index: {}]
  %s9 = inlined_call_operand.<no memory space> [shape: f32[1,1], index: 9, kind: input, shape index: {}]
  %s10 = inlined_call_operand.vmem [shape: f32[1,128], index: 10, kind: output, shape index: {}]
  %s11 = sld [smem:[#allocation0]]
  $region50: #{critic_forward.1} parent=0
    _
  %s13 = ssub.s32 1, %s11
  %s14 = scalar_select 0, %s13, %s11
  %15 = sst [smem:[#allocation2]] %s9
  // Predicated region
  $region2: #{critic_forward.1} parent=0 // pred_check
    _
  $region3: #{critic_forward.1} parent=0 // pred_check_branch
    %17 = sbr.rel (0) target = $region5
  $region4: #{critic_forward.1} parent=0 // pred_region
    _
  $region5: #{critic_forward.1} parent=0 // pred_fallthru
    _
  // Predicated region
  $region6: #{critic_forward.1} parent=0 // pred_check
    _
  $region7: #{critic_forward.1} parent=0 // pred_check_branch
    %19 = sbr.rel (0) target = $region9
  $region8: #{critic_forward.1} parent=0 // pred_region
    _
  $region9: #{critic_forward.1} parent=0 // pred_fallthru
    _
  // Predicated region
  $region10: #{critic_forward.1} parent=0 // pred_check
    _
  $region11: #{critic_forward.1} parent=0 // pred_check_branch
    %21 = sbr.rel (0) target = $region13
  $region12: #{critic_forward.1} parent=0 // pred_region
    _
  $region13: #{critic_forward.1} parent=0 // pred_fallthru
    _
  // Predicated region
  $region14: #{critic_forward.1} parent=0 // pred_check
    _
  $region15: #{critic_forward.1} parent=0 // pred_check_branch
    %23 = sbr.rel (0) target = $region17
  $region16: #{critic_forward.1} parent=0 // pred_region
    _
  $region17: #{critic_forward.1} parent=0 // pred_fallthru
    _
  // Predicated region
  $region18: #{critic_forward.1} parent=0 // pred_check
    _
  $region19: #{critic_forward.1} parent=0 // pred_check_branch
    %25 = sbr.rel (0) target = $region21
  $region20: #{critic_forward.1} parent=0 // pred_region
    _
  $region21: #{critic_forward.1} parent=0 // pred_fallthru
    _
  // Predicated region
  $region22: #{critic_forward.1} parent=0 // pred_check
    _
  $region23: #{critic_forward.1} parent=0 // pred_check_branch
    %27 = sbr.rel (0) target = $region25
  $region24: #{critic_forward.1} parent=0 // pred_region
    _
  $region25: #{critic_forward.1} parent=0 // pred_fallthru
    _
  // Predicated region
  $region26: #{critic_forward.1} parent=0 // pred_check
    _
  $region27: #{critic_forward.1} parent=0 // pred_check_branch
    %29 = sbr.rel (0) target = $region29
  $region28: #{critic_forward.1} parent=0 // pred_region
    _
  $region29: #{critic_forward.1} parent=0 // pred_fallthru
    _
  // Predicated region
  $region30: #{critic_forward.1} parent=0 // pred_check
    _
  $region31: #{critic_forward.1} parent=0 // pred_check_branch
    %31 = sbr.rel (0) target = $region33
  $region32: #{critic_forward.1} parent=0 // pred_region
    _
  $region33: #{critic_forward.1} parent=0 // pred_fallthru
    _
  // Predicated region
  $region34: #{critic_forward.1} parent=0 // pred_check
    _
  $region35: #{critic_forward.1} parent=0 // pred_check_branch
    %33 = sbr.rel (0) target = $region37
  $region36: #{critic_forward.1} parent=0 // pred_region
    _
  $region37: #{critic_forward.1} parent=0 // pred_fallthru
    _
  // Predicated region
  $region38: #{critic_forward.1} parent=0 // pred_check
    _
  $region39: #{critic_forward.1} parent=0 // pred_check_branch
    %35 = sbr.rel (0) target = $region41
  $region40: #{critic_forward.1} parent=0 // pred_region
    _
  $region41: #{critic_forward.1} parent=0 // pred_fallthru
    _
  %v36 = vld [vmem:[%s0] sm:$0xff]
  %v37 = vld [vmem:[%s0 + $0x8] sm:$0xff]
  %v38 = vld [vmem:[%s0 + $0x10] sm:$0xff]
  %v39 = vld [vmem:[%s0 + $0x18] sm:$0xff]
  %v40 = vld [vmem:[%s0 + $0x20] sm:$0xff]
  %v41 = vld [vmem:[%s0 + $0x28] sm:$0xff]
  %v42 = vld [vmem:[%s0 + $0x30] sm:$0xff]
  %v43 = vld [vmem:[%s0 + $0x38] sm:$0xff]
  %v44 = vld [vmem:[%s0 + $0x40] sm:$0xff]
  %v45 = vld [vmem:[%s0 + $0x48] sm:$0xff]
  %v46 = vld [vmem:[%s0 + $0x50] sm:$0xff]
  %v47 = vld [vmem:[%s0 + $0x58] sm:$0xff]
  %v48 = vld [vmem:[%s0 + $0x60] sm:$0xff]
  %v49 = vld [vmem:[%s0 + $0x68] sm:$0xff]
  %v50 = vld [vmem:[%s0 + $0x70] sm:$0xff]
  %v51 = vld [vmem:[%s0 + $0x78] sm:$0xff]
  %v52 = vld [vmem:[%s1] sm:$0xff]
  %v53 = vld [vmem:[%s1 + $0x8] sm:$0xff]
  %v54 = vld [vmem:[%s1 + $0x10] sm:$0xff]
  %v55 = vld [vmem:[%s1 + $0x18] sm:$0xff]
  %v56 = vld [vmem:[%s1 + $0x20] sm:$0xff]
  %v57 = vld [vmem:[%s1 + $0x28] sm:$0xff]
  %v58 = vld [vmem:[%s1 + $0x30] sm:$0xff]
  %v59 = vld [vmem:[%s1 + $0x38] sm:$0xff]
  %v60 = vld [vmem:[%s1 + $0x40] sm:$0xff]
  %v61 = vld [vmem:[%s1 + $0x48] sm:$0xff]
  %v62 = vld [vmem:[%s1 + $0x50] sm:$0xff]
  %v63 = vld [vmem:[%s1 + $0x58] sm:$0xff]
  %v64 = vld [vmem:[%s1 + $0x60] sm:$0xff]
  %v65 = vld [vmem:[%s1 + $0x68] sm:$0xff]
  %v66 = vld [vmem:[%s1 + $0x70] sm:$0xff]
  %v67 = vld [vmem:[%s1 + $0x78] sm:$0xff]
  %v68 = vld [vmem:[%s2] sm:$0xff]
  %v69 = vld [vmem:[%s2 + $0x8] sm:$0xff]
  %v70 = vld [vmem:[%s2 + $0x10] sm:$0xff]
  %v71 = vld [vmem:[%s2 + $0x18] sm:$0xff]
  %v72 = vld [vmem:[%s3] sm:$0xff]
  %v73 = vld [vmem:[%s3 + $0x8] sm:$0xff]
  %v74 = vld [vmem:[%s3 + $0x10] sm:$0xff]
  %v75 = vld [vmem:[%s3 + $0x18] sm:$0xff]
  %77 = vset.pattern.permute.xlu0 0
  %78 = vperm.xlu0 %77, %v72
  %v79 = vpop.permute.xlu0 %78
  %82 = vset.pattern.permute.xlu0 0
  %83 = vperm.xlu0 %82, %v73
  %v84 = vpop.permute.xlu0 %83
  %87 = vset.pattern.permute.xlu0 0
  %88 = vperm.xlu0 %87, %v74
  %v89 = vpop.permute.xlu0 %88
  %92 = vset.pattern.permute.xlu0 0
  %93 = vperm.xlu0 %92, %v75
  %v94 = vpop.permute.xlu0 %93
  %vm96 = vcmask 130048
  %v98 = vsel %vm96, %v68, 0
  %v101 = vsel %vm96, %v69, 0
  %v104 = vsel %vm96, %v70, 0
  %v107 = vsel %vm96, %v71, 0
  %v110 = vsel %vm96, %v36, 0
  %v113 = vsel %vm96, %v37, 0
  %v116 = vsel %vm96, %v38, 0
  %v119 = vsel %vm96, %v39, 0
  %v122 = vsel %vm96, %v40, 0
  %v125 = vsel %vm96, %v41, 0
  %v128 = vsel %vm96, %v42, 0
  %v131 = vsel %vm96, %v43, 0
  %v134 = vsel %vm96, %v44, 0
  %v137 = vsel %vm96, %v45, 0
  %v140 = vsel %vm96, %v46, 0
  %v143 = vsel %vm96, %v47, 0
  %v146 = vsel %vm96, %v48, 0
  %v149 = vsel %vm96, %v49, 0
  %v152 = vsel %vm96, %v50, 0
  %v155 = vsel %vm96, %v51, 0
  %157 = vmatprep.subr.mxu0 0.0
  %158 = vmatpush1.xpose.msra.mxu0 %v110
  %159 = vmatprep.subr.mxu0 0.0
  %160 = vmatpush1.xpose.msra.mxu0 %v113
  %161 = vmatprep.subr.mxu0 0.0
  %162 = vmatpush1.xpose.msra.mxu0 %v116
  %163 = vmatprep.subr.mxu0 0.0
  %164 = vmatpush1.xpose.msra.mxu0 %v119
  %165 = vmatprep.subr.mxu0 0.0
  %166 = vmatpush1.xpose.msra.mxu0 %v122
  %167 = vmatprep.subr.mxu0 0.0
  %168 = vmatpush1.xpose.msra.mxu0 %v125
  %169 = vmatprep.subr.mxu0 0.0
  %170 = vmatpush1.xpose.msra.mxu0 %v128
  %171 = vmatprep.subr.mxu0 0.0
  %172 = vmatpush1.xpose.msra.mxu0 %v131
  %173 = vmatprep.subr.mxu0 0.0
  %174 = vmatpush1.xpose.msra.mxu0 %v134
  %175 = vmatprep.subr.mxu0 0.0
  %176 = vmatpush1.xpose.msra.mxu0 %v137
  %177 = vmatprep.subr.mxu0 0.0
  %178 = vmatpush1.xpose.msra.mxu0 %v140
  %179 = vmatprep.subr.mxu0 0.0
  %180 = vmatpush1.xpose.msra.mxu0 %v143
  %181 = vmatprep.subr.mxu0 0.0
  %182 = vmatpush1.xpose.msra.mxu0 %v146
  %183 = vmatprep.subr.mxu0 0.0
  %184 = vmatpush1.xpose.msra.mxu0 %v149
  %185 = vmatprep.subr.mxu0 0.0
  %186 = vmatpush1.xpose.msra.mxu0 %v152
  %187 = vmatprep.subr.mxu0 0.0
  %188 = vmatpush1.xpose.msra.mxu0 %v155
  %189 = vmatprep.subr.mxu0 0.0
  %190 = vmatpush1.xpose.msra.mxu0 0.0
  %191 = vmatprep.subr.mxu0 0.0
  %192 = vmatpush1.xpose.msra.mxu0 0.0
  %193 = vmatprep.subr.mxu0 0.0
  %194 = vmatpush1.xpose.msra.mxu0 0.0
  %195 = vmatprep.subr.mxu0 0.0
  %196 = vmatpush1.xpose.msra.mxu0 0.0
  %197 = vmatprep.subr.mxu0 0.0
  %198 = vmatpush1.xpose.msra.mxu0 0.0
  %199 = vmatprep.subr.mxu0 0.0
  %200 = vmatpush1.xpose.msra.mxu0 0.0
  %201 = vmatprep.subr.mxu0 0.0
  %202 = vmatpush1.xpose.msra.mxu0 0.0
  %203 = vmatprep.subr.mxu0 0.0
  %204 = vmatpush1.xpose.msra.mxu0 0.0
  %205 = vmatprep.subr.mxu0 0.0
  %206 = vmatpush1.xpose.msra.mxu0 0.0
  %207 = vmatprep.subr.mxu0 0.0
  %208 = vmatpush1.xpose.msra.mxu0 0.0
  %209 = vmatprep.subr.mxu0 0.0
  %210 = vmatpush1.xpose.msra.mxu0 0.0
  %211 = vmatprep.subr.mxu0 0.0
  %212 = vmatpush1.xpose.msra.mxu0 0.0
  %213 = vmatprep.subr.mxu0 0.0
  %214 = vmatpush1.xpose.msra.mxu0 0.0
  %215 = vmatprep.subr.mxu0 0.0
  %216 = vmatpush1.xpose.msra.mxu0 0.0
  %217 = vmatprep.subr.mxu0 0.0
  %218 = vmatpush1.xpose.msra.mxu0 0.0
  %219 = vmatprep.subr.mxu0 0.0
  %220 = vmatpush1.xpose.msra.mxu0 0.0
  %221 = vmatprep.mubr.f32.mxu0 0.0
  %222 = vmatmul.mubr.f32.gmra.mrb[0].mxu0 %v98
  %v223 = vpop.f32.mrb[0].mxu0
  %v224 = vadd.f32 %v79, %v223
  %v225 = vpop.f32.mrb[0].mxu0
  %226 = vmatprep.mubr.f32.mxu0 0.0
  %227 = vmatmul.mubr.f32.gmra.mrb[0].mxu0 %v101
  %v228 = vpop.f32.mrb[0].mxu0
  %v229 = vadd.f32 %v84, %v228
  %v230 = vpop.f32.mrb[0].mxu0
  %231 = vmatprep.mubr.f32.mxu0 0.0
  %232 = vmatmul.mubr.f32.gmra.mrb[0].mxu0 %v104
  %v233 = vpop.f32.mrb[0].mxu0
  %v234 = vadd.f32 %v89, %v233
  %v235 = vpop.f32.mrb[0].mxu0
  %236 = vmatprep.mubr.f32.mxu0 0.0
  %237 = vmatmul.mubr.f32.gmra.mrb[0].mxu0 %v107
  %v238 = vpop.f32.mrb[0].mxu0
  %v239 = vadd.f32 %v94, %v238
  %v240 = vpop.f32.mrb[0].mxu0
  %241 = vdwg.mxu0
  %v242 = vmax.f32 %v224, 0.0
  %v243 = vmax.f32 %v229, 0.0
  %v244 = vmax.f32 %v234, 0.0
  %v245 = vmax.f32 %v239, 0.0
  %v246 = vld [vmem:[%s4] sm:$0xff]
  %v247 = vld [vmem:[%s4 + $0x8] sm:$0xff]
  %v248 = vld [vmem:[%s4 + $0x10] sm:$0xff]
  %v249 = vld [vmem:[%s4 + $0x18] sm:$0xff]
  %v250 = vld [vmem:[%s5] sm:$0xff]
  %v251 = vld [vmem:[%s5 + $0x8] sm:$0xff]
  %v252 = vld [vmem:[%s5 + $0x10] sm:$0xff]
  %v253 = vld [vmem:[%s5 + $0x18] sm:$0xff]
  %255 = vset.pattern.permute.xlu0 0
  %256 = vperm.xlu0 %255, %v250
  %v257 = vpop.permute.xlu0 %256
  %260 = vset.pattern.permute.xlu0 0
  %261 = vperm.xlu0 %260, %v251
  %v262 = vpop.permute.xlu0 %261
  %265 = vset.pattern.permute.xlu0 0
  %266 = vperm.xlu0 %265, %v252
  %v267 = vpop.permute.xlu0 %266
  %270 = vset.pattern.permute.xlu0 0
  %271 = vperm.xlu0 %270, %v253
  %v272 = vpop.permute.xlu0 %271
  %vm274 = vcmask 64512
  %v276 = vsel %vm274, %v246, 0
  %v279 = vsel %vm274, %v247, 0
  %v282 = vsel %vm274, %v248, 0
  %v285 = vsel %vm274, %v249, 0
  %v288 = vsel %vm274, %v52, 0
  %v291 = vsel %vm274, %v53, 0
  %v294 = vsel %vm274, %v54, 0
  %v297 = vsel %vm274, %v55, 0
  %v300 = vsel %vm274, %v56, 0
  %v303 = vsel %vm274, %v57, 0
  %v306 = vsel %vm274, %v58, 0
  %v309 = vsel %vm274, %v59, 0
  %v312 = vsel %vm274, %v60, 0
  %v315 = vsel %vm274, %v61, 0
  %v318 = vsel %vm274, %v62, 0
  %v321 = vsel %vm274, %v63, 0
  %v324 = vsel %vm274, %v64, 0
  %v327 = vsel %vm274, %v65, 0
  %v330 = vsel %vm274, %v66, 0
  %v333 = vsel %vm274, %v67, 0
  %335 = vmatprep.subr.mxu0 0.0
  %336 = vmatpush1.xpose.msra.mxu0 %v288
  %337 = vmatprep.subr.mxu0 0.0
  %338 = vmatpush1.xpose.msra.mxu0 %v291
  %339 = vmatprep.subr.mxu0 0.0
  %340 = vmatpush1.xpose.msra.mxu0 %v294
  %341 = vmatprep.subr.mxu0 0.0
  %342 = vmatpush1.xpose.msra.mxu0 %v297
  %343 = vmatprep.subr.mxu0 0.0
  %344 = vmatpush1.xpose.msra.mxu0 %v300
  %345 = vmatprep.subr.mxu0 0.0
  %346 = vmatpush1.xpose.msra.mxu0 %v303
  %347 = vmatprep.subr.mxu0 0.0
  %348 = vmatpush1.xpose.msra.mxu0 %v306
  %349 = vmatprep.subr.mxu0 0.0
  %350 = vmatpush1.xpose.msra.mxu0 %v309
  %351 = vmatprep.subr.mxu0 0.0
  %352 = vmatpush1.xpose.msra.mxu0 %v312
  %353 = vmatprep.subr.mxu0 0.0
  %354 = vmatpush1.xpose.msra.mxu0 %v315
  %355 = vmatprep.subr.mxu0 0.0
  %356 = vmatpush1.xpose.msra.mxu0 %v318
  %357 = vmatprep.subr.mxu0 0.0
  %358 = vmatpush1.xpose.msra.mxu0 %v321
  %359 = vmatprep.subr.mxu0 0.0
  %360 = vmatpush1.xpose.msra.mxu0 %v324
  %361 = vmatprep.subr.mxu0 0.0
  %362 = vmatpush1.xpose.msra.mxu0 %v327
  %363 = vmatprep.subr.mxu0 0.0
  %364 = vmatpush1.xpose.msra.mxu0 %v330
  %365 = vmatprep.subr.mxu0 0.0
  %366 = vmatpush1.xpose.msra.mxu0 %v333
  %367 = vmatprep.subr.mxu0 0.0
  %368 = vmatpush1.xpose.msra.mxu0 0.0
  %369 = vmatprep.subr.mxu0 0.0
  %370 = vmatpush1.xpose.msra.mxu0 0.0
  %371 = vmatprep.subr.mxu0 0.0
  %372 = vmatpush1.xpose.msra.mxu0 0.0
  %373 = vmatprep.subr.mxu0 0.0
  %374 = vmatpush1.xpose.msra.mxu0 0.0
  %375 = vmatprep.subr.mxu0 0.0
  %376 = vmatpush1.xpose.msra.mxu0 0.0
  %377 = vmatprep.subr.mxu0 0.0
  %378 = vmatpush1.xpose.msra.mxu0 0.0
  %379 = vmatprep.subr.mxu0 0.0
  %380 = vmatpush1.xpose.msra.mxu0 0.0
  %381 = vmatprep.subr.mxu0 0.0
  %382 = vmatpush1.xpose.msra.mxu0 0.0
  %383 = vmatprep.subr.mxu0 0.0
  %384 = vmatpush1.xpose.msra.mxu0 0.0
  %385 = vmatprep.subr.mxu0 0.0
  %386 = vmatpush1.xpose.msra.mxu0 0.0
  %387 = vmatprep.subr.mxu0 0.0
  %388 = vmatpush1.xpose.msra.mxu0 0.0
  %389 = vmatprep.subr.mxu0 0.0
  %390 = vmatpush1.xpose.msra.mxu0 0.0
  %391 = vmatprep.subr.mxu0 0.0
  %392 = vmatpush1.xpose.msra.mxu0 0.0
  %393 = vmatprep.subr.mxu0 0.0
  %394 = vmatpush1.xpose.msra.mxu0 0.0
  %395 = vmatprep.subr.mxu0 0.0
  %396 = vmatpush1.xpose.msra.mxu0 0.0
  %397 = vmatprep.subr.mxu0 0.0
  %398 = vmatpush1.xpose.msra.mxu0 0.0
  %399 = vmatprep.mubr.f32.mxu0 0.0
  %400 = vmatmul.mubr.f32.gmra.mrb[0].mxu0 %v276
  %v401 = vpop.f32.mrb[0].mxu0
  %v402 = vadd.f32 %v257, %v401
  %v403 = vpop.f32.mrb[0].mxu0
  %404 = vmatprep.mubr.f32.mxu0 0.0
  %405 = vmatmul.mubr.f32.gmra.mrb[0].mxu0 %v279
  %v406 = vpop.f32.mrb[0].mxu0
  %v407 = vadd.f32 %v262, %v406
  %v408 = vpop.f32.mrb[0].mxu0
  %409 = vmatprep.mubr.f32.mxu0 0.0
  %410 = vmatmul.mubr.f32.gmra.mrb[0].mxu0 %v282
  %v411 = vpop.f32.mrb[0].mxu0
  %v412 = vadd.f32 %v267, %v411
  %v413 = vpop.f32.mrb[0].mxu0
  %414 = vmatprep.mubr.f32.mxu0 0.0
  %415 = vmatmul.mubr.f32.gmra.mrb[0].mxu0 %v285
  %v416 = vpop.f32.mrb[0].mxu0
  %v417 = vadd.f32 %v272, %v416
  %v418 = vpop.f32.mrb[0].mxu0
  %419 = vdwg.mxu0
  %v420 = vmax.f32 %v402, 0.0
  %v421 = vmax.f32 %v407, 0.0
  %v422 = vmax.f32 %v412, 0.0
  %v423 = vmax.f32 %v417, 0.0
  %v424 = vld [vmem:[%s6] sm:$0xff]
  %v425 = vld [vmem:[%s6 + $0x8] sm:$0xff]
  %v426 = vld [vmem:[%s6 + $0x10] sm:$0xff]
  %v427 = vld [vmem:[%s6 + $0x18] sm:$0xff]
  %v428 = vld [vmem:[%s7] sm:$0xff]
  %v429 = vld [vmem:[%s7 + $0x8] sm:$0xff]
  %v430 = vld [vmem:[%s7 + $0x10] sm:$0xff]
  %v431 = vld [vmem:[%s7 + $0x18] sm:$0xff]
  %433 = vset.pattern.permute.xlu0 0
  %434 = vperm.xlu0 %433, %v428
  %v435 = vpop.permute.xlu0 %434
  %438 = vset.pattern.permute.xlu0 0
  %439 = vperm.xlu0 %438, %v429
  %v440 = vpop.permute.xlu0 %439
  %443 = vset.pattern.permute.xlu0 0
  %444 = vperm.xlu0 %443, %v430
  %v445 = vpop.permute.xlu0 %444
  %448 = vset.pattern.permute.xlu0 0
  %449 = vperm.xlu0 %448, %v431
  %v450 = vpop.permute.xlu0 %449
  %vm452 = vcmask 523264
  %v454 = vsel %vm452, %v424, 0
  %v457 = vsel %vm452, %v425, 0
  %v460 = vsel %vm452, %v426, 0
  %v463 = vsel %vm452, %v427, 0
  %465 = vmatprep.subr.mxu0 0.0
  %466 = vmatpush1.msra.mxu0 %v242
  %467 = vmatprep.subr.mxu0 0.0
  %468 = vmatpush1.msra.mxu0 %v243
  %469 = vmatprep.subr.mxu0 0.0
  %470 = vmatpush1.msra.mxu0 %v244
  %471 = vmatprep.subr.mxu0 0.0
  %472 = vmatpush1.msra.mxu0 %v245
  %473 = vmatprep.subr.mxu0 0.0
  %474 = vmatpush1.msra.mxu0 %v420
  %475 = vmatprep.subr.mxu0 0.0
  %476 = vmatpush1.msra.mxu0 %v421
  %477 = vmatprep.subr.mxu0 0.0
  %478 = vmatpush1.msra.mxu0 %v422
  %479 = vmatprep.subr.mxu0 0.0
  %480 = vmatpush1.msra.mxu0 %v423
  %481 = vmatprep.subr.mxu0 0.0
  %482 = vmatpush1.msra.mxu0 0.0
  %483 = vmatprep.subr.mxu0 0.0
  %484 = vmatpush1.msra.mxu0 0.0
  %485 = vmatprep.subr.mxu0 0.0
  %486 = vmatpush1.msra.mxu0 0.0
  %487 = vmatprep.subr.mxu0 0.0
  %488 = vmatpush1.msra.mxu0 0.0
  %489 = vmatprep.subr.mxu0 0.0
  %490 = vmatpush1.msra.mxu0 0.0
  %491 = vmatprep.subr.mxu0 0.0
  %492 = vmatpush1.msra.mxu0 0.0
  %493 = vmatprep.subr.mxu0 0.0
  %494 = vmatpush1.msra.mxu0 0.0
  %495 = vmatprep.subr.mxu0 0.0
  %496 = vmatpush1.msra.mxu0 0.0
  %497 = vmatprep.subr.mxu0 0.0
  %498 = vmatpush1.msra.mxu0 0.0
  %499 = vmatprep.subr.mxu0 0.0
  %500 = vmatpush1.msra.mxu0 0.0
  %501 = vmatprep.subr.mxu0 0.0
  %502 = vmatpush1.msra.mxu0 0.0
  %503 = vmatprep.subr.mxu0 0.0
  %504 = vmatpush1.msra.mxu0 0.0
  %505 = vmatprep.subr.mxu0 0.0
  %506 = vmatpush1.msra.mxu0 0.0
  %507 = vmatprep.subr.mxu0 0.0
  %508 = vmatpush1.msra.mxu0 0.0
  %509 = vmatprep.subr.mxu0 0.0
  %510 = vmatpush1.msra.mxu0 0.0
  %511 = vmatprep.subr.mxu0 0.0
  %512 = vmatpush1.msra.mxu0 0.0
  %513 = vmatprep.subr.mxu0 0.0
  %514 = vmatpush1.msra.mxu0 0.0
  %515 = vmatprep.subr.mxu0 0.0
  %516 = vmatpush1.msra.mxu0 0.0
  %517 = vmatprep.subr.mxu0 0.0
  %518 = vmatpush1.msra.mxu0 0.0
  %519 = vmatprep.subr.mxu0 0.0
  %520 = vmatpush1.msra.mxu0 0.0
  %521 = vmatprep.subr.mxu0 0.0
  %522 = vmatpush1.msra.mxu0 0.0
  %523 = vmatprep.subr.mxu0 0.0
  %524 = vmatpush1.msra.mxu0 0.0
  %525 = vmatprep.subr.mxu0 0.0
  %526 = vmatpush1.msra.mxu0 0.0
  %527 = vmatprep.subr.mxu0 0.0
  %528 = vmatpush1.msra.mxu0 0.0
  %529 = vmatprep.mubr.f32.mxu0 0.0
  %530 = vmatmul.mubr.f32.gmra.mrb[0].mxu0 %v454
  %v531 = vpop.f32.mrb[0].mxu0
  %v532 = vadd.f32 %v435, %v531
  %v533 = vpop.f32.mrb[0].mxu0
  %534 = vmatprep.mubr.f32.mxu0 0.0
  %535 = vmatmul.mubr.f32.gmra.mrb[0].mxu0 %v457
  %v536 = vpop.f32.mrb[0].mxu0
  %v537 = vadd.f32 %v440, %v536
  %v538 = vpop.f32.mrb[0].mxu0
  %539 = vmatprep.mubr.f32.mxu0 0.0
  %540 = vmatmul.mubr.f32.gmra.mrb[0].mxu0 %v460
  %v541 = vpop.f32.mrb[0].mxu0
  %v542 = vadd.f32 %v445, %v541
  %v543 = vpop.f32.mrb[0].mxu0
  %544 = vmatprep.mubr.f32.mxu0 0.0
  %545 = vmatmul.mubr.f32.gmra.mrb[0].mxu0 %v463
  %v546 = vpop.f32.mrb[0].mxu0
  %v547 = vadd.f32 %v450, %v546
  %v548 = vpop.f32.mrb[0].mxu0
  %549 = vdwg.mxu0
  %v550 = vmax.f32 %v532, 0.0
  %v551 = vmax.f32 %v537, 0.0
  %v552 = vmax.f32 %v542, 0.0
  %v553 = vmax.f32 %v547, 0.0
  %v554 = vld [vmem:[%s8] sm:$0xff]
  %v555 = vld [vmem:[%s8 + $0x8] sm:$0xff]
  %v556 = vld [vmem:[%s8 + $0x10] sm:$0xff]
  %v557 = vld [vmem:[%s8 + $0x18] sm:$0xff]
  %559 = vset.pattern.permute.xlu0 0
  %560 = vperm.xlu0 %559, %v554
  %v561 = vpop.permute.xlu0 %560
  %564 = vset.pattern.permute.xlu0 0
  %565 = vperm.xlu0 %564, %v555
  %v566 = vpop.permute.xlu0 %565
  %569 = vset.pattern.permute.xlu0 0
  %570 = vperm.xlu0 %569, %v556
  %v571 = vpop.permute.xlu0 %570
  %574 = vset.pattern.permute.xlu0 0
  %575 = vperm.xlu0 %574, %v557
  %v576 = vpop.permute.xlu0 %575
  %v578 = vmul.f32 %v550, %v561
  %v579 = vmul.f32 %v551, %v566
  %v580 = vmul.f32 %v552, %v571
  %v581 = vmul.f32 %v553, %v576
  %v582 = vadd.f32 %v578, %v579
  %v583 = vadd.f32 %v582, %v580
  %v584 = vadd.f32 %v583, %v581
  %v585 = vrot.slane %v584, 4
  %v586 = vadd.f32 %v584, %v585
  %v587 = vrot.slane %v586, 2
  %v588 = vadd.f32 %v586, %v587
  %v589 = vrot.slane %v588, 1
  %v590 = vadd.f32 %v588, %v589
  %s591 = sld [smem:[#allocation2]]
  %v592 = vstv %s591
  %v593 = vadd.f32 %v590, %v592
  %594 = vst [vmem:[%s10] sm:$0x1] %v593
  // Predicated region
  $region42: #{critic_forward.1} parent=0 // pred_check
    _
  $region43: #{critic_forward.1} parent=0 // pred_check_branch
    %596 = sbr.rel (0) target = $region45
  $region44: #{critic_forward.1} parent=0 // pred_region
    _
  $region45: #{critic_forward.1} parent=0 // pred_fallthru
    _
  // Predicated region
  $region46: #{critic_forward.1} parent=0 // pred_check
    _
  $region47: #{critic_forward.1} parent=0 // pred_check_branch
    %598 = sbr.rel (0) target = $region49
  $region48: #{critic_forward.1} parent=0 // pred_region
    _
  $region49: #{critic_forward.1} parent=0 // pred_fallthru
    _

</llo_original>
